<compile_context>
chip_gen: v6e
topology: v6e:2x2x1
jax: 0.10.0
libtpu: 0.0.40
codegen_flags: <defaults>
</compile_context>

<pallas_src>
import functools

import jax
import jax.numpy as jnp
from jax.experimental import pallas as pl
from jax.experimental.pallas import tpu as pltpu

_LANE = 128
_SUBLANE = 8


def _round_up(n, m):
    return ((n + m - 1) // m) * m


def _pad_to(a, shape):
    return jnp.pad(a, [(0, s - d) for d, s in zip(a.shape, shape)])


def _mlp_kernel(x_ref, w1_ref, b1_ref, w2_ref, b2_ref, w3_ref, b3_ref, o_ref):
    # ---- Layer 1 (contraction K = in_dim, tiny): VPU broadcast-FMAs, not the MXU ----
    in_dim = x_ref.shape[1]
    h1 = b1_ref[...]                                  # (1, Hp) f32, broadcasts over rows
    for k in range(in_dim):                           # static, tiny (in_dim == 2)
        h1 = h1 + x_ref[:, k:k + 1] * w1_ref[k:k + 1, :]
    h1 = jnp.maximum(h1, 0.0)                         # (tb, Hp) f32

    # ---- Layer 2: MXU matmul (bf16 or f32 inputs, f32 accumulate) + bias + ReLU ----
    cdt = w2_ref.dtype
    h2 = jnp.dot(h1.astype(cdt), w2_ref[...], preferred_element_type=jnp.float32)
    h2 = jnp.maximum(h2 + b2_ref[...], 0.0)

    # ---- Layer 3: MXU matmul + bias; lane-dense (128-multiple) store ----
    h3 = jnp.dot(h2.astype(cdt), w3_ref[...], preferred_element_type=jnp.float32)
    o_ref[...] = (h3 + b3_ref[...]).astype(o_ref.dtype)


@functools.partial(jax.jit, static_argnames=("block_batch", "matmul_dtype"))
def image_memorizer_forward(x, w1, b1, w2, b2, w3, b3, *,
                            block_batch=2048, matmul_dtype=jnp.bfloat16):
    """x: (B, in_dim) f32.  w*: (fan_in, fan_out) pre-transposed, b*: (1, fan_out)."""
    B, in_dim = x.shape
    hidden = w1.shape[1]
    out_dim = w3.shape[1]

    # Lane-dense padded feature dims (exact zero padding keeps ReLU/bias lanes inert).
    hid_p = _round_up(hidden, _LANE)
    out_p = _round_up(out_dim, _LANE)
    in_p = _round_up(in_dim, _LANE)  # physical lane padding of the x tile (VMEM budget only)

    # Batch tile: as large as requested, but capped so the double-buffered x/out tiles plus
    # f32 intermediates fit the default scoped-VMEM limit on every generation
    # (v5e 16 MiB, v6e 32 MiB, v7x 32 of 64 MiB) without setting vmem_limit_bytes.
    budget_bytes = 12 << 20
    row_bytes = 2 * in_p * 4 + 2 * out_p * 4 + 4 * hid_p * 4
    tb_cap = max(_SUBLANE, (budget_bytes // row_bytes) // _SUBLANE * _SUBLANE)
    tb = min(_round_up(block_batch, _SUBLANE), tb_cap, _round_up(B, _SUBLANE))

    B_pad = _round_up(B, tb)
    grid = (B_pad // tb,)

    x_p = _pad_to(x, (B_pad, in_dim))
    w1_p = _pad_to(w1, (in_dim, hid_p)).astype(jnp.float32)   # layer-1 stays f32 on the VPU
    b1_p = _pad_to(b1, (1, hid_p)).astype(jnp.float32)
    w2_p = _pad_to(w2, (hid_p, hid_p)).astype(matmul_dtype)
    b2_p = _pad_to(b2, (1, hid_p)).astype(jnp.float32)
    w3_p = _pad_to(w3, (hid_p, out_p)).astype(matmul_dtype)
    b3_p = _pad_to(b3, (1, out_p)).astype(jnp.float32)

    # Weights/biases are small: give every grid step the full tensor.
    full = lambda shape: pl.BlockSpec(shape, lambda i: (0, 0))

    out_full = pl.pallas_call(
        _mlp_kernel,
        out_shape=jax.ShapeDtypeStruct((B_pad, out_p), x.dtype),
        grid_spec=pltpu.PrefetchScalarGridSpec(
            num_scalar_prefetch=0,
            grid=grid,
            in_specs=[
                pl.BlockSpec((tb, in_dim), lambda i: (i, 0)),   # x tile
                full((in_dim, hid_p)),                          # w1
                full((1, hid_p)),                               # b1
                full((hid_p, hid_p)),                           # w2
                full((1, hid_p)),                               # b2
                full((hid_p, out_p)),                           # w3
                full((1, out_p)),                               # b3
            ],
            out_specs=pl.BlockSpec((tb, out_p), lambda i: (i, 0)),  # lane-dense output
        ),
        compiler_params=pltpu.CompilerParams(
            dimension_semantics=("parallel",),
        ),
    )(x_p, w1_p, b1_p, w2_p, b2_p, w3_p, b3_p)

    # Strip batch / lane padding back to the logical shape.
    return out_full[:B, :out_dim]


def _init_linear(key, fan_in, fan_out):
    """Deterministic init matching torch.nn.Linear default: U(-1/sqrt(fan_in), 1/sqrt(fan_in)).
    Returned weight is already transposed to (fan_in, fan_out)."""
    kw, kb = jax.random.split(key)
    bound = 1.0 / jnp.sqrt(fan_in)
    w = jax.random.uniform(kw, (fan_in, fan_out), jnp.float32, -bound, bound)
    b = jax.random.uniform(kb, (1, fan_out), jnp.float32, -bound, bound)
    return w, b


if __name__ == "__main__":
    # ImageMemorizer maps (x, y) pixel coordinates -> RGB: in_dim=2, out_dim=3.
    in_dim, hidden_dim, out_dim = 2, 32, 3
    batch = 50  # deliberately not a multiple of 8 to exercise the padded-tail path

    key = jax.random.PRNGKey(0)
    kx, k1, k2, k3 = jax.random.split(key, 4)

    x = jax.random.normal(kx, (batch, in_dim), jnp.float32)
    w1, b1 = _init_linear(k1, in_dim, hidden_dim)
    w2, b2 = _init_linear(k2, hidden_dim, hidden_dim)
    w3, b3 = _init_linear(k3, hidden_dim, out_dim)

    # Pure-JAX reference of the same forward pass.
    ref = jnp.maximum(x @ w1 + b1, 0.0)
    ref = jnp.maximum(ref @ w2 + b2, 0.0)
    ref = ref @ w3 + b3

    # Exact f32 path.
    out_f32 = jax.block_until_ready(
        image_memorizer_forward(x, w1, b1, w2, b2, w3, b3, matmul_dtype=jnp.float32))
    assert out_f32.shape == (batch, out_dim)
    assert jnp.allclose(out_f32, ref, atol=1e-4, rtol=1e-4)

    # bf16-matmul fast path (v6e/v7x MXU); looser tolerance is expected for bf16 inputs.
    out_bf16 = jax.block_until_ready(
        image_memorizer_forward(x, w1, b1, w2, b2, w3, b3, matmul_dtype=jnp.bfloat16))
    assert out_bf16.shape == (batch, out_dim)
    assert jnp.allclose(out_bf16, ref, atol=5e-2, rtol=5e-2)

    print("KERNEL_OK")
</pallas_src>

<mosaic_0001>
module attributes {stable_mosaic.version = 11 : i64} {
  func.func @_mlp_kernel(%arg0: i32, %arg1: memref<56x2xf32, #tpu.memory_space<vmem>>, %arg2: memref<2x128xf32, #tpu.memory_space<vmem>>, %arg3: memref<1x128xf32, #tpu.memory_space<vmem>>, %arg4: memref<128x128xf32, #tpu.memory_space<vmem>>, %arg5: memref<1x128xf32, #tpu.memory_space<vmem>>, %arg6: memref<128x128xf32, #tpu.memory_space<vmem>>, %arg7: memref<1x128xf32, #tpu.memory_space<vmem>>, %arg8: memref<56x128xf32, #tpu.memory_space<vmem>>) attributes {dimension_semantics = [#tpu.dimension_semantics<parallel>], iteration_bounds = array<i64: 1>, scalar_prefetch = 0 : i64, scratch_operands = 0 : i64, tpu.core_type = #tpu.core_type<tc>, window_params = [{transform_indices = @transform_0, window_bounds = array<i64: 56, 2>}, {pipeline_mode = #tpu.pipeline_mode<synchronous>, transform_indices = @transform_1, window_bounds = array<i64: 2, 128>}, {pipeline_mode = #tpu.pipeline_mode<synchronous>, transform_indices = @transform_2, window_bounds = array<i64: 1, 128>}, {pipeline_mode = #tpu.pipeline_mode<synchronous>, transform_indices = @transform_3, window_bounds = array<i64: 128, 128>}, {pipeline_mode = #tpu.pipeline_mode<synchronous>, transform_indices = @transform_4, window_bounds = array<i64: 1, 128>}, {pipeline_mode = #tpu.pipeline_mode<synchronous>, transform_indices = @transform_5, window_bounds = array<i64: 128, 128>}, {pipeline_mode = #tpu.pipeline_mode<synchronous>, transform_indices = @transform_6, window_bounds = array<i64: 1, 128>}, {transform_indices = @transform_7, window_bounds = array<i64: 56, 128>}]} {
    %c0 = arith.constant 0 : index
    %c0_0 = arith.constant 0 : index
    %0 = vector.load %arg3[%c0, %c0_0] : memref<1x128xf32, #tpu.memory_space<vmem>>, vector<1x128xf32>
    %c0_1 = arith.constant 0 : index
    %c0_2 = arith.constant 0 : index
    %1 = vector.load %arg1[%c0_1, %c0_2] : memref<56x2xf32, #tpu.memory_space<vmem>>, vector<56x1xf32>
    %c0_3 = arith.constant 0 : index
    %c0_4 = arith.constant 0 : index
    %2 = vector.load %arg2[%c0_3, %c0_4] : memref<2x128xf32, #tpu.memory_space<vmem>>, vector<1x128xf32>
    %3 = vector.broadcast %1 : vector<56x1xf32> to vector<56x128xf32>
    %4 = vector.broadcast %2 : vector<1x128xf32> to vector<56x128xf32>
    %5 = arith.mulf %3, %4 : vector<56x128xf32>
    %6 = vector.broadcast %0 : vector<1x128xf32> to vector<56x128xf32>
    %7 = arith.addf %6, %5 : vector<56x128xf32>
    %c0_5 = arith.constant 0 : index
    %c1 = arith.constant 1 : index
    %8 = vector.load %arg1[%c0_5, %c1] : memref<56x2xf32, #tpu.memory_space<vmem>>, vector<56x1xf32>
    %c1_6 = arith.constant 1 : index
    %c0_7 = arith.constant 0 : index
    %9 = vector.load %arg2[%c1_6, %c0_7] : memref<2x128xf32, #tpu.memory_space<vmem>>, vector<1x128xf32>
    %10 = vector.broadcast %8 : vector<56x1xf32> to vector<56x128xf32>
    %11 = vector.broadcast %9 : vector<1x128xf32> to vector<56x128xf32>
    %12 = arith.mulf %10, %11 : vector<56x128xf32>
    %13 = arith.addf %7, %12 : vector<56x128xf32>
    %cst = arith.constant 0.000000e+00 : f32
    %14 = vector.broadcast %cst : f32 to vector<56x128xf32>
    %15 = arith.maximumf %13, %14 : vector<56x128xf32>
    %c0_8 = arith.constant 0 : index
    %c0_9 = arith.constant 0 : index
    %16 = vector.load %arg4[%c0_8, %c0_9] : memref<128x128xf32, #tpu.memory_space<vmem>>, vector<128x128xf32>
    %cst_10 = arith.constant dense<0.000000e+00> : vector<56x128xf32>
    %17 = tpu.matmul %15, %16, %cst_10 {dimension_numbers = #tpu.dot_dimension_numbers<[1], [0], [0], [1], [0, 0, 1, 1], [], []>} : vector<56x128xf32>, vector<128x128xf32>, vector<56x128xf32> -> vector<56x128xf32>
    %c0_11 = arith.constant 0 : index
    %c0_12 = arith.constant 0 : index
    %18 = vector.load %arg5[%c0_11, %c0_12] : memref<1x128xf32, #tpu.memory_space<vmem>>, vector<1x128xf32>
    %19 = vector.broadcast %18 : vector<1x128xf32> to vector<56x128xf32>
    %20 = arith.addf %17, %19 : vector<56x128xf32>
    %cst_13 = arith.constant 0.000000e+00 : f32
    %21 = vector.broadcast %cst_13 : f32 to vector<56x128xf32>
    %22 = arith.maximumf %20, %21 : vector<56x128xf32>
    %c0_14 = arith.constant 0 : index
    %c0_15 = arith.constant 0 : index
    %23 = vector.load %arg6[%c0_14, %c0_15] : memref<128x128xf32, #tpu.memory_space<vmem>>, vector<128x128xf32>
    %cst_16 = arith.constant dense<0.000000e+00> : vector<56x128xf32>
    %24 = tpu.matmul %22, %23, %cst_16 {dimension_numbers = #tpu.dot_dimension_numbers<[1], [0], [0], [1], [0, 0, 1, 1], [], []>} : vector<56x128xf32>, vector<128x128xf32>, vector<56x128xf32> -> vector<56x128xf32>
    %c0_17 = arith.constant 0 : index
    %c0_18 = arith.constant 0 : index
    %25 = vector.load %arg7[%c0_17, %c0_18] : memref<1x128xf32, #tpu.memory_space<vmem>>, vector<1x128xf32>
    %26 = vector.broadcast %25 : vector<1x128xf32> to vector<56x128xf32>
    %27 = arith.addf %24, %26 : vector<56x128xf32>
    %c0_19 = arith.constant 0 : index
    %c0_20 = arith.constant 0 : index
    %28 = vector.load %arg8[%c0_19, %c0_20] : memref<56x128xf32, #tpu.memory_space<vmem>>, vector<56x128xf32>
    tpu.vector_store %arg8[%c0_19, %c0_20], %27 {strides = array<i32>} : memref<56x128xf32, #tpu.memory_space<vmem>>, vector<56x128xf32>,
    return
  }
  func.func @transform_0(%arg0: i32) -> (i32, i32) {
    %c0_i32 = arith.constant 0 : i32
    %c0_i32_0 = arith.constant 0 : i32
    return %arg0, %c0_i32 : i32, i32
  }
  func.func @transform_1(%arg0: i32) -> (i32, i32) {
    %c0_i32 = arith.constant 0 : i32
    %c0_i32_0 = arith.constant 0 : i32
    %c0_i32_1 = arith.constant 0 : i32
    return %c0_i32, %c0_i32_0 : i32, i32
  }
  func.func @transform_2(%arg0: i32) -> (i32, i32) {
    %c0_i32 = arith.constant 0 : i32
    %c0_i32_0 = arith.constant 0 : i32
    %c0_i32_1 = arith.constant 0 : i32
    return %c0_i32, %c0_i32_0 : i32, i32
  }
  func.func @transform_3(%arg0: i32) -> (i32, i32) {
    %c0_i32 = arith.constant 0 : i32
    %c0_i32_0 = arith.constant 0 : i32
    %c0_i32_1 = arith.constant 0 : i32
    return %c0_i32, %c0_i32_0 : i32, i32
  }
  func.func @transform_4(%arg0: i32) -> (i32, i32) {
    %c0_i32 = arith.constant 0 : i32
    %c0_i32_0 = arith.constant 0 : i32
    %c0_i32_1 = arith.constant 0 : i32
    return %c0_i32, %c0_i32_0 : i32, i32
  }
  func.func @transform_5(%arg0: i32) -> (i32, i32) {
    %c0_i32 = arith.constant 0 : i32
    %c0_i32_0 = arith.constant 0 : i32
    %c0_i32_1 = arith.constant 0 : i32
    return %c0_i32, %c0_i32_0 : i32, i32
  }
  func.func @transform_6(%arg0: i32) -> (i32, i32) {
    %c0_i32 = arith.constant 0 : i32
    %c0_i32_0 = arith.constant 0 : i32
    %c0_i32_1 = arith.constant 0 : i32
    return %c0_i32, %c0_i32_0 : i32, i32
  }
  func.func @transform_7(%arg0: i32) -> (i32, i32) {
    %c0_i32 = arith.constant 0 : i32
    %c0_i32_0 = arith.constant 0 : i32
    return %arg0, %c0_i32 : i32, i32
  }
}

</mosaic_0001>

<llo_original>
// kernel: image_memorizer_forward.1
$region0: #{image_memorizer_forward.1}
  #allocation0 [shape = 'u32[]', space=smem, size = 0x4, offset = 0x4, fixed_abs, tag = 'smem constant byte address 0x4 - core index']
  #allocation1 [shape = 'u32[144,128]{1,0:T(1,128)}', space=vmem, size = 0x12000, scoped, tag = 'internal scratch']
  %s0 = inlined_call_operand.vmem [shape: f32[56,2], index: 0, kind: input, shape index: {}]
  %s1 = inlined_call_operand.vmem [shape: f32[2,128], index: 1, kind: input, shape index: {}]
  %s2 = inlined_call_operand.vmem [shape: f32[1,128], index: 2, kind: input, shape index: {}]
  %s3 = inlined_call_operand.vmem [shape: f32[128,128], index: 3, kind: input, shape index: {}]
  %s4 = inlined_call_operand.vmem [shape: f32[1,128], index: 4, kind: input, shape index: {}]
  %s5 = inlined_call_operand.vmem [shape: f32[128,128], index: 5, kind: input, shape index: {}]
  %s6 = inlined_call_operand.vmem [shape: f32[1,128], index: 6, kind: input, shape index: {}]
  %s7 = inlined_call_operand.vmem [shape: f32[56,128], index: 7, kind: output, shape index: {}]
  %s8 = sld [smem:[#allocation0]]
  $region38: #{image_memorizer_forward.1} parent=0
    _
  %s10 = ssub.s32 1, %s8
  %s11 = scalar_select 0, %s10, %s8
  // Predicated region
  $region2: #{image_memorizer_forward.1} parent=0 // pred_check
    _
  $region3: #{image_memorizer_forward.1} parent=0 // pred_check_branch
    %13 = sbr.rel (0) target = $region5
  $region4: #{image_memorizer_forward.1} parent=0 // pred_region
    _
  $region5: #{image_memorizer_forward.1} parent=0 // pred_fallthru
    _
  // Predicated region
  $region6: #{image_memorizer_forward.1} parent=0 // pred_check
    _
  $region7: #{image_memorizer_forward.1} parent=0 // pred_check_branch
    %15 = sbr.rel (0) target = $region9
  $region8: #{image_memorizer_forward.1} parent=0 // pred_region
    _
  $region9: #{image_memorizer_forward.1} parent=0 // pred_fallthru
    _
  // Predicated region
  $region10: #{image_memorizer_forward.1} parent=0 // pred_check
    _
  $region11: #{image_memorizer_forward.1} parent=0 // pred_check_branch
    %17 = sbr.rel (0) target = $region13
  $region12: #{image_memorizer_forward.1} parent=0 // pred_region
    _
  $region13: #{image_memorizer_forward.1} parent=0 // pred_fallthru
    _
  // Predicated region
  $region14: #{image_memorizer_forward.1} parent=0 // pred_check
    _
  $region15: #{image_memorizer_forward.1} parent=0 // pred_check_branch
    %19 = sbr.rel (0) target = $region17
  $region16: #{image_memorizer_forward.1} parent=0 // pred_region
    _
  $region17: #{image_memorizer_forward.1} parent=0 // pred_fallthru
    _
  // Predicated region
  $region18: #{image_memorizer_forward.1} parent=0 // pred_check
    _
  $region19: #{image_memorizer_forward.1} parent=0 // pred_check_branch
    %21 = sbr.rel (0) target = $region21
  $region20: #{image_memorizer_forward.1} parent=0 // pred_region
    _
  $region21: #{image_memorizer_forward.1} parent=0 // pred_fallthru
    _
  // Predicated region
  $region22: #{image_memorizer_forward.1} parent=0 // pred_check
    _
  $region23: #{image_memorizer_forward.1} parent=0 // pred_check_branch
    %23 = sbr.rel (0) target = $region25
  $region24: #{image_memorizer_forward.1} parent=0 // pred_region
    _
  $region25: #{image_memorizer_forward.1} parent=0 // pred_fallthru
    _
  // Predicated region
  $region26: #{image_memorizer_forward.1} parent=0 // pred_check
    _
  $region27: #{image_memorizer_forward.1} parent=0 // pred_check_branch
    %25 = sbr.rel (0) target = $region29
  $region28: #{image_memorizer_forward.1} parent=0 // pred_region
    _
  $region29: #{image_memorizer_forward.1} parent=0 // pred_fallthru
    _
  %v26 = vld [vmem:[%s2] sm:$0x1]
  %v27 = vld [vmem:[%s0] sm:$0xff]
  %v28 = vld [vmem:[%s0 + $0x8] sm:$0xff]
  %v29 = vld [vmem:[%s0 + $0x10] sm:$0xff]
  %v30 = vld [vmem:[%s0 + $0x18] sm:$0xff]
  %v31 = vld [vmem:[%s0 + $0x20] sm:$0xff]
  %v32 = vld [vmem:[%s0 + $0x28] sm:$0xff]
  %v33 = vld [vmem:[%s0 + $0x30] sm:$0xff]
  %v34 = vld [vmem:[%s1] sm:$0x1]
  %36 = vset.pattern.permute.xlu0 0
  %37 = vperm.xlu0 %36, %v27
  %v38 = vpop.permute.xlu0 %37
  %41 = vset.pattern.permute.xlu0 0
  %42 = vperm.xlu0 %41, %v28
  %v43 = vpop.permute.xlu0 %42
  %46 = vset.pattern.permute.xlu0 0
  %47 = vperm.xlu0 %46, %v29
  %v48 = vpop.permute.xlu0 %47
  %51 = vset.pattern.permute.xlu0 0
  %52 = vperm.xlu0 %51, %v30
  %v53 = vpop.permute.xlu0 %52
  %56 = vset.pattern.permute.xlu0 0
  %57 = vperm.xlu0 %56, %v31
  %v58 = vpop.permute.xlu0 %57
  %61 = vset.pattern.permute.xlu0 0
  %62 = vperm.xlu0 %61, %v32
  %v63 = vpop.permute.xlu0 %62
  %66 = vset.pattern.permute.xlu0 0
  %67 = vperm.xlu0 %66, %v33
  %v68 = vpop.permute.xlu0 %67
  %v70 = vlaneseq
  %v71 = vshrl.u32 %v70, 7
  %v72 = vsub.s32 0, %v71
  %v73 = vrot.slane %v34, %v72
  %v74 = vmul.f32 %v38, %v73
  %v75 = vmul.f32 %v43, %v73
  %v76 = vmul.f32 %v48, %v73
  %v77 = vmul.f32 %v53, %v73
  %v78 = vmul.f32 %v58, %v73
  %v79 = vmul.f32 %v63, %v73
  %v80 = vmul.f32 %v68, %v73
  %v82 = vlaneseq
  %v83 = vshrl.u32 %v82, 7
  %v84 = vsub.s32 0, %v83
  %v85 = vrot.slane %v26, %v84
  %v87 = vadd.f32 %v85, %v74
  %v88 = vadd.f32 %v85, %v75
  %v89 = vadd.f32 %v85, %v76
  %v90 = vadd.f32 %v85, %v77
  %v91 = vadd.f32 %v85, %v78
  %v92 = vadd.f32 %v85, %v79
  %v93 = vadd.f32 %v85, %v80
  %v94 = vld [vmem:[%s1 + $0x1] sm:$0x1]
  %95 = vset.pattern.permute.xlu0 1
  %96 = vperm.xlu0 %95, %v27
  %v97 = vpop.permute.xlu0 %96
  %99 = vset.pattern.permute.xlu0 1
  %100 = vperm.xlu0 %99, %v28
  %v101 = vpop.permute.xlu0 %100
  %103 = vset.pattern.permute.xlu0 1
  %104 = vperm.xlu0 %103, %v29
  %v105 = vpop.permute.xlu0 %104
  %107 = vset.pattern.permute.xlu0 1
  %108 = vperm.xlu0 %107, %v30
  %v109 = vpop.permute.xlu0 %108
  %111 = vset.pattern.permute.xlu0 1
  %112 = vperm.xlu0 %111, %v31
  %v113 = vpop.permute.xlu0 %112
  %115 = vset.pattern.permute.xlu0 1
  %116 = vperm.xlu0 %115, %v32
  %v117 = vpop.permute.xlu0 %116
  %119 = vset.pattern.permute.xlu0 1
  %120 = vperm.xlu0 %119, %v33
  %v121 = vpop.permute.xlu0 %120
  %v123 = vlaneseq
  %v124 = vshrl.u32 %v123, 7
  %v125 = vsub.s32 0, %v124
  %v126 = vrot.slane %v94, %v125
  %v127 = vmul.f32 %v97, %v126
  %v128 = vmul.f32 %v101, %v126
  %v129 = vmul.f32 %v105, %v126
  %v130 = vmul.f32 %v109, %v126
  %v131 = vmul.f32 %v113, %v126
  %v132 = vmul.f32 %v117, %v126
  %v133 = vmul.f32 %v121, %v126
  %v134 = vadd.f32 %v87, %v127
  %v135 = vadd.f32 %v88, %v128
  %v136 = vadd.f32 %v89, %v129
  %v137 = vadd.f32 %v90, %v130
  %v138 = vadd.f32 %v91, %v131
  %v139 = vadd.f32 %v92, %v132
  %v140 = vadd.f32 %v93, %v133
  %v141 = vmax.f32 %v134, 0.0
  %v142 = vmax.f32 %v135, 0.0
  %v143 = vmax.f32 %v136, 0.0
  %v144 = vmax.f32 %v137, 0.0
  %v145 = vmax.f32 %v138, 0.0
  %v146 = vmax.f32 %v139, 0.0
  %v147 = vmax.f32 %v140, 0.0
  %v148 = vld [vmem:[%s3] sm:$0xff]
  %v149 = vld [vmem:[%s3 + $0x8] sm:$0xff]
  %v150 = vld [vmem:[%s3 + $0x10] sm:$0xff]
  %v151 = vld [vmem:[%s3 + $0x18] sm:$0xff]
  %v152 = vld [vmem:[%s3 + $0x20] sm:$0xff]
  %v153 = vld [vmem:[%s3 + $0x28] sm:$0xff]
  %v154 = vld [vmem:[%s3 + $0x30] sm:$0xff]
  %v155 = vld [vmem:[%s3 + $0x38] sm:$0xff]
  %v156 = vld [vmem:[%s3 + $0x40] sm:$0xff]
  %v157 = vld [vmem:[%s3 + $0x48] sm:$0xff]
  %v158 = vld [vmem:[%s3 + $0x50] sm:$0xff]
  %v159 = vld [vmem:[%s3 + $0x58] sm:$0xff]
  %v160 = vld [vmem:[%s3 + $0x60] sm:$0xff]
  %v161 = vld [vmem:[%s3 + $0x68] sm:$0xff]
  %v162 = vld [vmem:[%s3 + $0x70] sm:$0xff]
  %v163 = vld [vmem:[%s3 + $0x78] sm:$0xff]
  %v164 = vld [vmem:[%s4] sm:$0x1]
  %v166 = vlaneseq
  %v167 = vshrl.u32 %v166, 7
  %v168 = vsub.s32 0, %v167
  %v169 = vrot.slane %v164, %v168
  %171 = vmatprep.subr.mxu0 0.0
  %172 = vmatpush1.msra.mxu0 %v163
  %173 = vmatprep.subr.mxu0 0.0
  %174 = vmatpush1.msra.mxu0 %v162
  %175 = vmatprep.subr.mxu0 0.0
  %176 = vmatpush1.msra.mxu0 %v161
  %177 = vmatprep.subr.mxu0 0.0
  %178 = vmatpush1.msra.mxu0 %v160
  %179 = vmatprep.subr.mxu0 0.0
  %180 = vmatpush1.msra.mxu0 %v159
  %181 = vmatprep.subr.mxu0 0.0
  %182 = vmatpush1.msra.mxu0 %v158
  %183 = vmatprep.subr.mxu0 0.0
  %184 = vmatpush1.msra.mxu0 %v157
  %185 = vmatprep.subr.mxu0 0.0
  %186 = vmatpush1.msra.mxu0 %v156
  %187 = vmatprep.subr.mxu0 0.0
  %188 = vmatpush1.msra.mxu0 %v155
  %189 = vmatprep.subr.mxu0 0.0
  %190 = vmatpush1.msra.mxu0 %v154
  %191 = vmatprep.subr.mxu0 0.0
  %192 = vmatpush1.msra.mxu0 %v153
  %193 = vmatprep.subr.mxu0 0.0
  %194 = vmatpush1.msra.mxu0 %v152
  %195 = vmatprep.subr.mxu0 0.0
  %196 = vmatpush1.msra.mxu0 %v151
  %197 = vmatprep.subr.mxu0 0.0
  %198 = vmatpush1.msra.mxu0 %v150
  %199 = vmatprep.subr.mxu0 0.0
  %200 = vmatpush1.msra.mxu0 %v149
  %201 = vmatprep.subr.mxu0 0.0
  %202 = vmatpush1.msra.mxu0 %v148
  %203 = vmatprep.subr.mxu0 0.0
  %204 = vmatpush2.msra.mxu0 0.0
  %205 = vmatprep.subr.mxu0 0.0
  %206 = vmatpush2.msra.mxu0 0.0
  %207 = vmatprep.subr.mxu0 0.0
  %208 = vmatpush2.msra.mxu0 0.0
  %209 = vmatprep.subr.mxu0 0.0
  %210 = vmatpush2.msra.mxu0 0.0
  %211 = vmatprep.subr.mxu0 0.0
  %212 = vmatpush2.msra.mxu0 0.0
  %213 = vmatprep.subr.mxu0 0.0
  %214 = vmatpush2.msra.mxu0 0.0
  %215 = vmatprep.subr.mxu0 0.0
  %216 = vmatpush2.msra.mxu0 0.0
  %217 = vmatprep.subr.mxu0 0.0
  %218 = vmatpush2.msra.mxu0 0.0
  %219 = vmatprep.subr.mxu0 0.0
  %220 = vmatpush2.msra.mxu0 0.0
  %221 = vmatprep.subr.mxu0 0.0
  %222 = vmatpush2.msra.mxu0 0.0
  %223 = vmatprep.subr.mxu0 0.0
  %224 = vmatpush2.msra.mxu0 0.0
  %225 = vmatprep.subr.mxu0 0.0
  %226 = vmatpush2.msra.mxu0 0.0
  %227 = vmatprep.subr.mxu0 0.0
  %228 = vmatpush2.msra.mxu0 0.0
  %229 = vmatprep.subr.mxu0 0.0
  %230 = vmatpush2.msra.mxu0 0.0
  %231 = vmatprep.subr.mxu0 0.0
  %232 = vmatpush2.msra.mxu0 0.0
  %233 = vmatprep.subr.mxu0 0.0
  %234 = vmatpush2.msra.mxu0 0.0
  %235 = vmatprep.mubr.f32.mxu0 0.0
  %236 = vmatmul.mubr.f32.gmra.mxu0 %v141
  %v237 = vpop.f32.mrf.mxu0
  %v238 = vadd.f32 %v169, %v237
  %v239 = vpop.f32.mrf.mxu0
  %240 = vmatprep.mubr.f32.mxu0 0.0
  %241 = vmatmul.mubr.f32.gmra.mxu0 %v142
  %v242 = vpop.f32.mrf.mxu0
  %v243 = vadd.f32 %v169, %v242
  %v244 = vpop.f32.mrf.mxu0
  %245 = vmatprep.mubr.f32.mxu0 0.0
  %246 = vmatmul.mubr.f32.gmra.mxu0 %v143
  %v247 = vpop.f32.mrf.mxu0
  %v248 = vadd.f32 %v169, %v247
  %v249 = vpop.f32.mrf.mxu0
  %250 = vmatprep.mubr.f32.mxu0 0.0
  %251 = vmatmul.mubr.f32.gmra.mxu0 %v144
  %v252 = vpop.f32.mrf.mxu0
  %v253 = vadd.f32 %v169, %v252
  %v254 = vpop.f32.mrf.mxu0
  %255 = vmatprep.mubr.f32.mxu0 0.0
  %256 = vmatmul.mubr.f32.gmra.mxu0 %v145
  %v257 = vpop.f32.mrf.mxu0
  %v258 = vadd.f32 %v169, %v257
  %v259 = vpop.f32.mrf.mxu0
  %260 = vmatprep.mubr.f32.mxu0 0.0
  %261 = vmatmul.mubr.f32.gmra.mxu0 %v146
  %v262 = vpop.f32.mrf.mxu0
  %v263 = vadd.f32 %v169, %v262
  %v264 = vpop.f32.mrf.mxu0
  %265 = vmatprep.mubr.f32.mxu0 0.0
  %266 = vmatmul.mubr.f32.gmra.mxu0 %v147
  %v267 = vpop.f32.mrf.mxu0
  %v268 = vadd.f32 %v169, %v267
  %v269 = vpop.f32.mrf.mxu0
  %270 = vdwg.mxu0
  %v271 = vmax.f32 %v238, 0.0
  %v272 = vmax.f32 %v243, 0.0
  %v273 = vmax.f32 %v248, 0.0
  %v274 = vmax.f32 %v253, 0.0
  %v275 = vmax.f32 %v258, 0.0
  %v276 = vmax.f32 %v263, 0.0
  %v277 = vmax.f32 %v268, 0.0
  %v278 = vld [vmem:[%s5] sm:$0xff]
  %v279 = vld [vmem:[%s5 + $0x8] sm:$0xff]
  %v280 = vld [vmem:[%s5 + $0x10] sm:$0xff]
  %v281 = vld [vmem:[%s5 + $0x18] sm:$0xff]
  %v282 = vld [vmem:[%s5 + $0x20] sm:$0xff]
  %v283 = vld [vmem:[%s5 + $0x28] sm:$0xff]
  %v284 = vld [vmem:[%s5 + $0x30] sm:$0xff]
  %v285 = vld [vmem:[%s5 + $0x38] sm:$0xff]
  %v286 = vld [vmem:[%s5 + $0x40] sm:$0xff]
  %v287 = vld [vmem:[%s5 + $0x48] sm:$0xff]
  %v288 = vld [vmem:[%s5 + $0x50] sm:$0xff]
  %v289 = vld [vmem:[%s5 + $0x58] sm:$0xff]
  %v290 = vld [vmem:[%s5 + $0x60] sm:$0xff]
  %v291 = vld [vmem:[%s5 + $0x68] sm:$0xff]
  %v292 = vld [vmem:[%s5 + $0x70] sm:$0xff]
  %v293 = vld [vmem:[%s5 + $0x78] sm:$0xff]
  %v294 = vld [vmem:[%s6] sm:$0x1]
  %v296 = vlaneseq
  %v297 = vshrl.u32 %v296, 7
  %v298 = vsub.s32 0, %v297
  %v299 = vrot.slane %v294, %v298
  %301 = vmatprep.subr.mxu0 0.0
  %302 = vmatpush1.msra.mxu0 %v293
  %303 = vmatprep.subr.mxu0 0.0
  %304 = vmatpush1.msra.mxu0 %v292
  %305 = vmatprep.subr.mxu0 0.0
  %306 = vmatpush1.msra.mxu0 %v291
  %307 = vmatprep.subr.mxu0 0.0
  %308 = vmatpush1.msra.mxu0 %v290
  %309 = vmatprep.subr.mxu0 0.0
  %310 = vmatpush1.msra.mxu0 %v289
  %311 = vmatprep.subr.mxu0 0.0
  %312 = vmatpush1.msra.mxu0 %v288
  %313 = vmatprep.subr.mxu0 0.0
  %314 = vmatpush1.msra.mxu0 %v287
  %315 = vmatprep.subr.mxu0 0.0
  %316 = vmatpush1.msra.mxu0 %v286
  %317 = vmatprep.subr.mxu0 0.0
  %318 = vmatpush1.msra.mxu0 %v285
  %319 = vmatprep.subr.mxu0 0.0
  %320 = vmatpush1.msra.mxu0 %v284
  %321 = vmatprep.subr.mxu0 0.0
  %322 = vmatpush1.msra.mxu0 %v283
  %323 = vmatprep.subr.mxu0 0.0
  %324 = vmatpush1.msra.mxu0 %v282
  %325 = vmatprep.subr.mxu0 0.0
  %326 = vmatpush1.msra.mxu0 %v281
  %327 = vmatprep.subr.mxu0 0.0
  %328 = vmatpush1.msra.mxu0 %v280
  %329 = vmatprep.subr.mxu0 0.0
  %330 = vmatpush1.msra.mxu0 %v279
  %331 = vmatprep.subr.mxu0 0.0
  %332 = vmatpush1.msra.mxu0 %v278
  %333 = vmatprep.subr.mxu0 0.0
  %334 = vmatpush2.msra.mxu0 0.0
  %335 = vmatprep.subr.mxu0 0.0
  %336 = vmatpush2.msra.mxu0 0.0
  %337 = vmatprep.subr.mxu0 0.0
  %338 = vmatpush2.msra.mxu0 0.0
  %339 = vmatprep.subr.mxu0 0.0
  %340 = vmatpush2.msra.mxu0 0.0
  %341 = vmatprep.subr.mxu0 0.0
  %342 = vmatpush2.msra.mxu0 0.0
  %343 = vmatprep.subr.mxu0 0.0
  %344 = vmatpush2.msra.mxu0 0.0
  %345 = vmatprep.subr.mxu0 0.0
  %346 = vmatpush2.msra.mxu0 0.0
  %347 = vmatprep.subr.mxu0 0.0
  %348 = vmatpush2.msra.mxu0 0.0
  %349 = vmatprep.subr.mxu0 0.0
  %350 = vmatpush2.msra.mxu0 0.0
  %351 = vmatprep.subr.mxu0 0.0
  %352 = vmatpush2.msra.mxu0 0.0
  %353 = vmatprep.subr.mxu0 0.0
  %354 = vmatpush2.msra.mxu0 0.0
  %355 = vmatprep.subr.mxu0 0.0
  %356 = vmatpush2.msra.mxu0 0.0
  %357 = vmatprep.subr.mxu0 0.0
  %358 = vmatpush2.msra.mxu0 0.0
  %359 = vmatprep.subr.mxu0 0.0
  %360 = vmatpush2.msra.mxu0 0.0
  %361 = vmatprep.subr.mxu0 0.0
  %362 = vmatpush2.msra.mxu0 0.0
  %363 = vmatprep.subr.mxu0 0.0
  %364 = vmatpush2.msra.mxu0 0.0
  %365 = vmatprep.mubr.f32.mxu0 0.0
  %366 = vmatmul.mubr.f32.gmra.mxu0 %v271
  %v367 = vpop.f32.mrf.mxu0
  %v368 = vadd.f32 %v299, %v367
  %v369 = vpop.f32.mrf.mxu0
  %370 = vmatprep.mubr.f32.mxu0 0.0
  %371 = vmatmul.mubr.f32.gmra.mxu0 %v272
  %v372 = vpop.f32.mrf.mxu0
  %v373 = vadd.f32 %v299, %v372
  %v374 = vpop.f32.mrf.mxu0
  %375 = vmatprep.mubr.f32.mxu0 0.0
  %376 = vmatmul.mubr.f32.gmra.mxu0 %v273
  %v377 = vpop.f32.mrf.mxu0
  %v378 = vadd.f32 %v299, %v377
  %v379 = vpop.f32.mrf.mxu0
  %380 = vmatprep.mubr.f32.mxu0 0.0
  %381 = vmatmul.mubr.f32.gmra.mxu0 %v274
  %v382 = vpop.f32.mrf.mxu0
  %v383 = vadd.f32 %v299, %v382
  %v384 = vpop.f32.mrf.mxu0
  %385 = vmatprep.mubr.f32.mxu0 0.0
  %386 = vmatmul.mubr.f32.gmra.mxu0 %v275
  %v387 = vpop.f32.mrf.mxu0
  %v388 = vadd.f32 %v299, %v387
  %v389 = vpop.f32.mrf.mxu0
  %390 = vmatprep.mubr.f32.mxu0 0.0
  %391 = vmatmul.mubr.f32.gmra.mxu0 %v276
  %v392 = vpop.f32.mrf.mxu0
  %v393 = vadd.f32 %v299, %v392
  %v394 = vpop.f32.mrf.mxu0
  %395 = vmatprep.mubr.f32.mxu0 0.0
  %396 = vmatmul.mubr.f32.gmra.mxu0 %v277
  %v397 = vpop.f32.mrf.mxu0
  %v398 = vadd.f32 %v299, %v397
  %v399 = vpop.f32.mrf.mxu0
  %400 = vdwg.mxu0
  %401 = vst [vmem:[%s7] sm:$0xff] %v368
  %402 = vst [vmem:[%s7 + $0x8] sm:$0xff] %v373
  %403 = vst [vmem:[%s7 + $0x10] sm:$0xff] %v378
  %404 = vst [vmem:[%s7 + $0x18] sm:$0xff] %v383
  %405 = vst [vmem:[%s7 + $0x20] sm:$0xff] %v388
  %406 = vst [vmem:[%s7 + $0x28] sm:$0xff] %v393
  %407 = vst [vmem:[%s7 + $0x30] sm:$0xff] %v398
  // Predicated region
  $region30: #{image_memorizer_forward.1} parent=0 // pred_check
    _
  $region31: #{image_memorizer_forward.1} parent=0 // pred_check_branch
    %409 = sbr.rel (0) target = $region33
  $region32: #{image_memorizer_forward.1} parent=0 // pred_region
    _
  $region33: #{image_memorizer_forward.1} parent=0 // pred_fallthru
    _
  // Predicated region
  $region34: #{image_memorizer_forward.1} parent=0 // pred_check
    _
  $region35: #{image_memorizer_forward.1} parent=0 // pred_check_branch
    %411 = sbr.rel (0) target = $region37
  $region36: #{image_memorizer_forward.1} parent=0 // pred_region
    _
  $region37: #{image_memorizer_forward.1} parent=0 // pred_fallthru
    _

</llo_original>
